<compile_context>
chip_gen: v7x
topology: tpu7x:2x2x1
jax: 0.10.0
libtpu: 0.0.40
codegen_flags: <defaults>
</compile_context>

<pallas_src>
import math
from functools import partial

import jax
import jax.numpy as jnp
from jax.experimental import pallas as pl
from jax.experimental.pallas import tpu as pltpu

_LANES = 128


def _layernorm_kernel(x_ref, a_ref, b_ref, o_ref, *, eps, d_hid, fold):
    x = x_ref[...].astype(jnp.float32)                  # (row_tile, width)
    inv_n = 1.0 / d_hid
    inv_nm1 = 1.0 / max(d_hid - 1, 1)                   # Bessel (torch.std); guard d_hid==1

    if fold == 1:
        # Two-pass moments over the already-resident tile (matches torch.std).
        mu = jnp.sum(x, axis=-1, keepdims=True) * inv_n
        d = x - mu
        var = jnp.sum(d * d, axis=-1, keepdims=True) * inv_nm1
        inv = pl.reciprocal(jnp.sqrt(var) + eps, approx=False)   # (row_tile, 1)
        y = d * inv
    else:
        # `fold` original rows are packed into the 128-wide lane axis; each
        # segment of d_hid lanes is an independent row. Exact f32 two-pass
        # moments via masked full-width reduces (VPU/XLU only, no reshapes).
        lane = jax.lax.broadcasted_iota(jnp.int32, x.shape, 1)
        mu_b = jnp.zeros_like(x)
        for f in range(fold):
            m = jnp.logical_and(lane >= f * d_hid, lane < (f + 1) * d_hid)
            s1 = jnp.sum(jnp.where(m, x, 0.0), axis=-1, keepdims=True)
            mu_b = jnp.where(m, s1 * inv_n, mu_b)
        d = x - mu_b
        dd = d * d
        inv_b = jnp.zeros_like(x)
        for f in range(fold):
            m = jnp.logical_and(lane >= f * d_hid, lane < (f + 1) * d_hid)
            s2 = jnp.sum(jnp.where(m, dd, 0.0), axis=-1, keepdims=True)
            inv = pl.reciprocal(jnp.sqrt(s2 * inv_nm1) + eps, approx=False)
            inv_b = jnp.where(m, inv, inv_b)
        y = d * inv_b

    y = y * a_ref[...] + b_ref[...]                     # gamma/beta already f32, resident
    o_ref[...] = y.astype(o_ref.dtype)


def _cdiv(a, b):
    return -(-a // b)


def _round_up(x, m):
    return ((x + m - 1) // m) * m


def _vmem_limit_bytes():
    """Explicit scoped-VMEM limit: 3/4 of physical VMEM (capped at 96 MiB).

    Covers v5e's 16 MiB scoped default when tiles grow, leaves headroom on
    v7x's 64 MiB per-TC VMEM.
    """
    phys = 64 << 20                                     # conservative fallback (v7x per-TC)
    try:
        info = pltpu.get_tpu_info()
        phys = int(getattr(info, "vmem_capacity_bytes", phys) or phys)
    except Exception:
        pass
    return int(min((phys * 3) // 4, 96 << 20))


def _choose_row_tile(rows, width_elems, in_itemsize):
    """Row tile for the 2-D (rows, width) problem.

    - dtype-aware sublane alignment (8 f32 / 16 bf16 / 32 int8-fp8)
    - ~4 MiB budget sized against the f32 in-kernel working tile, so the
      double-buffered HBM tiles plus f32 temporaries stay inside the explicit
      vmem_limit_bytes on every generation
    - even, (nearly) balanced block count so ("parallel",) load-balances
      v7x's two TensorCores; ragged last block stays close to full.
    """
    align = max(8, 32 // max(1, in_itemsize))
    if rows <= 2 * align:
        return rows                                     # single full block
    budget_bytes = 4 * 1024 * 1024                      # per f32 working tile
    row_bytes_f32 = width_elems * 4
    cap = budget_bytes // max(1, row_bytes_f32)
    cap = min(cap, 16384)
    cap = max(align, (cap // align) * align)
    nblocks = _cdiv(rows, cap)
    nblocks = max(2, nblocks + (nblocks & 1))           # even block count (megacore)
    tile = _round_up(_cdiv(rows, nblocks), align)
    return max(align, min(tile, cap))


def layer_normalization(z, a_2, b_2, eps=1e-7, row_tile=None):
    """Pallas equivalent of LayerNormalization.forward."""
    # PyTorch: if z.size(1) == 1: return z   (static shape -> Python if)
    if z.shape[1] == 1:
        return z

    d_hid = z.shape[-1]
    orig_shape = z.shape
    rows = 1
    for s in orig_shape[:-1]:
        rows *= s

    # Lane folding: pack `fold` consecutive rows into the lane axis so the
    # feature width becomes a multiple of 128 (lane-dense loads/stores).
    fold = 1
    if 1 <= d_hid < _LANES:
        f = _LANES // math.gcd(d_hid, _LANES)
        if 1 < f <= 16 and rows % f == 0:
            fold = f
    width = fold * d_hid
    r = rows // fold

    x2 = z.reshape(r, width)                            # zero-cost contiguous reshape

    if row_tile is None:
        row_tile = _choose_row_tile(r, width, jnp.dtype(z.dtype).itemsize)

    # gamma/beta cast (and tiled across folds) once in the wrapper; their
    # (1, width) block is grid-resident -> no per-step casts in the kernel.
    a2 = jnp.tile(a_2.reshape(1, d_hid).astype(jnp.float32), (1, fold))
    b2 = jnp.tile(b_2.reshape(1, d_hid).astype(jnp.float32), (1, fold))

    grid = (pl.cdiv(r, row_tile),)

    out = pl.pallas_call(
        partial(_layernorm_kernel, eps=eps, d_hid=d_hid, fold=fold),
        out_shape=jax.ShapeDtypeStruct((r, width), z.dtype),
        grid_spec=pltpu.PrefetchScalarGridSpec(
            num_scalar_prefetch=0,
            grid=grid,
            in_specs=[
                pl.BlockSpec((row_tile, width), lambda i: (i, 0)),
                pl.BlockSpec((1, width), lambda i: (0, 0)),
                pl.BlockSpec((1, width), lambda i: (0, 0)),
            ],
            out_specs=pl.BlockSpec((row_tile, width), lambda i: (i, 0)),
        ),
        compiler_params=pltpu.CompilerParams(
            dimension_semantics=("parallel",),
            vmem_limit_bytes=_vmem_limit_bytes(),
        ),
    )(x2, a2, b2)

    return out.reshape(orig_shape)


def _reference(z, a_2, b_2, eps=1e-7):
    """Pure-JAX reference matching the PyTorch forward."""
    if z.shape[1] == 1:
        return z
    zf = z.astype(jnp.float32)
    mu = jnp.mean(zf, axis=-1, keepdims=True)
    var = jnp.sum((zf - mu) ** 2, axis=-1, keepdims=True) / (z.shape[-1] - 1)
    sigma = jnp.sqrt(var)
    out = (zf - mu) / (sigma + eps)
    return (out * a_2 + b_2).astype(z.dtype)


if __name__ == "__main__":
    key = jax.random.PRNGKey(0)
    k1, k2 = jax.random.split(key)

    # Module-scale example: batch=2, seq=8, d_hid=32 (exercises the folded,
    # lane-dense path: fold=4 -> width=128).
    batch, seq, d_hid = 2, 8, 32
    z = jax.random.normal(k1, (batch, seq, d_hid), dtype=jnp.float32)
    a_2 = jnp.ones((d_hid,), dtype=jnp.float32)    # nn.Parameter(torch.ones(d_hid))
    b_2 = jnp.zeros((d_hid,), dtype=jnp.float32)   # nn.Parameter(torch.zeros(d_hid))

    ln = jax.jit(lambda z_, a_, b_: layer_normalization(z_, a_, b_, eps=1e-7))
    out = jax.block_until_ready(ln(z, a_2, b_2))
    ref = _reference(z, a_2, b_2, eps=1e-7)
    assert out.shape == z.shape
    assert jnp.allclose(out, ref, atol=1e-5, rtol=1e-5)

    # Also exercise the unfolded path (d_hid multiple of 128, multi-block grid
    # with a ragged last block).
    d_hid2 = 128
    z2 = jax.random.normal(k2, (3, 8, d_hid2), dtype=jnp.float32)
    a2p = jnp.ones((d_hid2,), dtype=jnp.float32)
    b2p = jnp.zeros((d_hid2,), dtype=jnp.float32)
    out2 = jax.block_until_ready(
        jax.jit(lambda z_, a_, b_: layer_normalization(z_, a_, b_, eps=1e-7))(z2, a2p, b2p))
    ref2 = _reference(z2, a2p, b2p, eps=1e-7)
    assert jnp.allclose(out2, ref2, atol=1e-5, rtol=1e-5)

    print("KERNEL_OK")
</pallas_src>

<mosaic_0001>
module attributes {stable_mosaic.version = 11 : i64} {
  func.func @_layernorm_kernel(%arg0: i32, %arg1: memref<4x128xf32, #tpu.memory_space<vmem>>, %arg2: memref<1x128xf32, #tpu.memory_space<vmem>>, %arg3: memref<1x128xf32, #tpu.memory_space<vmem>>, %arg4: memref<4x128xf32, #tpu.memory_space<vmem>>) attributes {dimension_semantics = [#tpu.dimension_semantics<parallel>], iteration_bounds = array<i64: 1>, scalar_prefetch = 0 : i64, scratch_operands = 0 : i64, tpu.core_type = #tpu.core_type<tc>, window_params = [{transform_indices = @transform_0, window_bounds = array<i64: 4, 128>}, {pipeline_mode = #tpu.pipeline_mode<synchronous>, transform_indices = @transform_1, window_bounds = array<i64: 1, 128>}, {pipeline_mode = #tpu.pipeline_mode<synchronous>, transform_indices = @transform_2, window_bounds = array<i64: 1, 128>}, {transform_indices = @transform_3, window_bounds = array<i64: 4, 128>}]} {
    %c0 = arith.constant 0 : index
    %c0_0 = arith.constant 0 : index
    %0 = vector.load %arg1[%c0, %c0_0] : memref<4x128xf32, #tpu.memory_space<vmem>>, vector<4x128xf32>
    %1 = tpu.iota {dimensions = array<i32: 1>} : vector<4x128xi32>
    %cst = arith.constant 0.000000e+00 : f32
    %2 = vector.broadcast %cst : f32 to vector<4x128xf32>
    %c0_i32 = arith.constant 0 : i32
    %3 = vector.broadcast %c0_i32 : i32 to vector<4x128xi32>
    %4 = arith.cmpi sge, %1, %3 : vector<4x128xi32>
    %c32_i32 = arith.constant 32 : i32
    %5 = vector.broadcast %c32_i32 : i32 to vector<4x128xi32>
    %6 = arith.cmpi slt, %1, %5 : vector<4x128xi32>
    %7 = arith.andi %4, %6 : vector<4x128xi1>
    %cst_1 = arith.constant 0.000000e+00 : f32
    %8 = vector.broadcast %cst_1 : f32 to vector<4x128xf32>
    %9 = arith.select %7, %0, %8 : vector<4x128xi1>, vector<4x128xf32>
    %cst_2 = arith.constant dense<0.000000e+00> : vector<4xf32>
    %10 = vector.multi_reduction <add>, %9, %cst_2 [1] : vector<4x128xf32> to vector<4xf32>
    %11 = vector.shape_cast %10 : vector<4xf32> to vector<4x1xf32>
    %cst_3 = arith.constant 3.125000e-02 : f32
    %12 = vector.broadcast %cst_3 : f32 to vector<4x1xf32>
    %13 = arith.mulf %11, %12 : vector<4x1xf32>
    %14 = vector.shape_cast %13 : vector<4x1xf32> to vector<4x1xf32>
    %15 = vector.broadcast %14 : vector<4x1xf32> to vector<4x128xf32>
    %16 = arith.select %7, %15, %2 : vector<4x128xi1>, vector<4x128xf32>
    %c32_i32_4 = arith.constant 32 : i32
    %17 = vector.broadcast %c32_i32_4 : i32 to vector<4x128xi32>
    %18 = arith.cmpi sge, %1, %17 : vector<4x128xi32>
    %c64_i32 = arith.constant 64 : i32
    %19 = vector.broadcast %c64_i32 : i32 to vector<4x128xi32>
    %20 = arith.cmpi slt, %1, %19 : vector<4x128xi32>
    %21 = arith.andi %18, %20 : vector<4x128xi1>
    %cst_5 = arith.constant 0.000000e+00 : f32
    %22 = vector.broadcast %cst_5 : f32 to vector<4x128xf32>
    %23 = arith.select %21, %0, %22 : vector<4x128xi1>, vector<4x128xf32>
    %cst_6 = arith.constant dense<0.000000e+00> : vector<4xf32>
    %24 = vector.multi_reduction <add>, %23, %cst_6 [1] : vector<4x128xf32> to vector<4xf32>
    %25 = vector.shape_cast %24 : vector<4xf32> to vector<4x1xf32>
    %cst_7 = arith.constant 3.125000e-02 : f32
    %26 = vector.broadcast %cst_7 : f32 to vector<4x1xf32>
    %27 = arith.mulf %25, %26 : vector<4x1xf32>
    %28 = vector.shape_cast %27 : vector<4x1xf32> to vector<4x1xf32>
    %29 = vector.broadcast %28 : vector<4x1xf32> to vector<4x128xf32>
    %30 = arith.select %21, %29, %16 : vector<4x128xi1>, vector<4x128xf32>
    %c64_i32_8 = arith.constant 64 : i32
    %31 = vector.broadcast %c64_i32_8 : i32 to vector<4x128xi32>
    %32 = arith.cmpi sge, %1, %31 : vector<4x128xi32>
    %c96_i32 = arith.constant 96 : i32
    %33 = vector.broadcast %c96_i32 : i32 to vector<4x128xi32>
    %34 = arith.cmpi slt, %1, %33 : vector<4x128xi32>
    %35 = arith.andi %32, %34 : vector<4x128xi1>
    %cst_9 = arith.constant 0.000000e+00 : f32
    %36 = vector.broadcast %cst_9 : f32 to vector<4x128xf32>
    %37 = arith.select %35, %0, %36 : vector<4x128xi1>, vector<4x128xf32>
    %cst_10 = arith.constant dense<0.000000e+00> : vector<4xf32>
    %38 = vector.multi_reduction <add>, %37, %cst_10 [1] : vector<4x128xf32> to vector<4xf32>
    %39 = vector.shape_cast %38 : vector<4xf32> to vector<4x1xf32>
    %cst_11 = arith.constant 3.125000e-02 : f32
    %40 = vector.broadcast %cst_11 : f32 to vector<4x1xf32>
    %41 = arith.mulf %39, %40 : vector<4x1xf32>
    %42 = vector.shape_cast %41 : vector<4x1xf32> to vector<4x1xf32>
    %43 = vector.broadcast %42 : vector<4x1xf32> to vector<4x128xf32>
    %44 = arith.select %35, %43, %30 : vector<4x128xi1>, vector<4x128xf32>
    %c96_i32_12 = arith.constant 96 : i32
    %45 = vector.broadcast %c96_i32_12 : i32 to vector<4x128xi32>
    %46 = arith.cmpi sge, %1, %45 : vector<4x128xi32>
    %c128_i32 = arith.constant 128 : i32
    %47 = vector.broadcast %c128_i32 : i32 to vector<4x128xi32>
    %48 = arith.cmpi slt, %1, %47 : vector<4x128xi32>
    %49 = arith.andi %46, %48 : vector<4x128xi1>
    %cst_13 = arith.constant 0.000000e+00 : f32
    %50 = vector.broadcast %cst_13 : f32 to vector<4x128xf32>
    %51 = arith.select %49, %0, %50 : vector<4x128xi1>, vector<4x128xf32>
    %cst_14 = arith.constant dense<0.000000e+00> : vector<4xf32>
    %52 = vector.multi_reduction <add>, %51, %cst_14 [1] : vector<4x128xf32> to vector<4xf32>
    %53 = vector.shape_cast %52 : vector<4xf32> to vector<4x1xf32>
    %cst_15 = arith.constant 3.125000e-02 : f32
    %54 = vector.broadcast %cst_15 : f32 to vector<4x1xf32>
    %55 = arith.mulf %53, %54 : vector<4x1xf32>
    %56 = vector.shape_cast %55 : vector<4x1xf32> to vector<4x1xf32>
    %57 = vector.broadcast %56 : vector<4x1xf32> to vector<4x128xf32>
    %58 = arith.select %49, %57, %44 : vector<4x128xi1>, vector<4x128xf32>
    %59 = arith.subf %0, %58 : vector<4x128xf32>
    %60 = arith.mulf %59, %59 : vector<4x128xf32>
    %cst_16 = arith.constant 0.000000e+00 : f32
    %61 = vector.broadcast %cst_16 : f32 to vector<4x128xf32>
    %c0_i32_17 = arith.constant 0 : i32
    %62 = vector.broadcast %c0_i32_17 : i32 to vector<4x128xi32>
    %63 = arith.cmpi sge, %1, %62 : vector<4x128xi32>
    %c32_i32_18 = arith.constant 32 : i32
    %64 = vector.broadcast %c32_i32_18 : i32 to vector<4x128xi32>
    %65 = arith.cmpi slt, %1, %64 : vector<4x128xi32>
    %66 = arith.andi %63, %65 : vector<4x128xi1>
    %cst_19 = arith.constant 0.000000e+00 : f32
    %67 = vector.broadcast %cst_19 : f32 to vector<4x128xf32>
    %68 = arith.select %66, %60, %67 : vector<4x128xi1>, vector<4x128xf32>
    %cst_20 = arith.constant dense<0.000000e+00> : vector<4xf32>
    %69 = vector.multi_reduction <add>, %68, %cst_20 [1] : vector<4x128xf32> to vector<4xf32>
    %70 = vector.shape_cast %69 : vector<4xf32> to vector<4x1xf32>
    %cst_21 = arith.constant 0.0322580636 : f32
    %71 = vector.broadcast %cst_21 : f32 to vector<4x1xf32>
    %72 = arith.mulf %70, %71 : vector<4x1xf32>
    %73 = math.sqrt %72 : vector<4x1xf32>
    %cst_22 = arith.constant 1.000000e-07 : f32
    %74 = vector.broadcast %cst_22 : f32 to vector<4x1xf32>
    %75 = arith.addf %73, %74 : vector<4x1xf32>
    %76 = tpu.reciprocal %75 : vector<4x1xf32> -> vector<4x1xf32>
    %77 = vector.shape_cast %76 : vector<4x1xf32> to vector<4x1xf32>
    %78 = vector.broadcast %77 : vector<4x1xf32> to vector<4x128xf32>
    %79 = arith.select %66, %78, %61 : vector<4x128xi1>, vector<4x128xf32>
    %c32_i32_23 = arith.constant 32 : i32
    %80 = vector.broadcast %c32_i32_23 : i32 to vector<4x128xi32>
    %81 = arith.cmpi sge, %1, %80 : vector<4x128xi32>
    %c64_i32_24 = arith.constant 64 : i32
    %82 = vector.broadcast %c64_i32_24 : i32 to vector<4x128xi32>
    %83 = arith.cmpi slt, %1, %82 : vector<4x128xi32>
    %84 = arith.andi %81, %83 : vector<4x128xi1>
    %cst_25 = arith.constant 0.000000e+00 : f32
    %85 = vector.broadcast %cst_25 : f32 to vector<4x128xf32>
    %86 = arith.select %84, %60, %85 : vector<4x128xi1>, vector<4x128xf32>
    %cst_26 = arith.constant dense<0.000000e+00> : vector<4xf32>
    %87 = vector.multi_reduction <add>, %86, %cst_26 [1] : vector<4x128xf32> to vector<4xf32>
    %88 = vector.shape_cast %87 : vector<4xf32> to vector<4x1xf32>
    %cst_27 = arith.constant 0.0322580636 : f32
    %89 = vector.broadcast %cst_27 : f32 to vector<4x1xf32>
    %90 = arith.mulf %88, %89 : vector<4x1xf32>
    %91 = math.sqrt %90 : vector<4x1xf32>
    %cst_28 = arith.constant 1.000000e-07 : f32
    %92 = vector.broadcast %cst_28 : f32 to vector<4x1xf32>
    %93 = arith.addf %91, %92 : vector<4x1xf32>
    %94 = tpu.reciprocal %93 : vector<4x1xf32> -> vector<4x1xf32>
    %95 = vector.shape_cast %94 : vector<4x1xf32> to vector<4x1xf32>
    %96 = vector.broadcast %95 : vector<4x1xf32> to vector<4x128xf32>
    %97 = arith.select %84, %96, %79 : vector<4x128xi1>, vector<4x128xf32>
    %c64_i32_29 = arith.constant 64 : i32
    %98 = vector.broadcast %c64_i32_29 : i32 to vector<4x128xi32>
    %99 = arith.cmpi sge, %1, %98 : vector<4x128xi32>
    %c96_i32_30 = arith.constant 96 : i32
    %100 = vector.broadcast %c96_i32_30 : i32 to vector<4x128xi32>
    %101 = arith.cmpi slt, %1, %100 : vector<4x128xi32>
    %102 = arith.andi %99, %101 : vector<4x128xi1>
    %cst_31 = arith.constant 0.000000e+00 : f32
    %103 = vector.broadcast %cst_31 : f32 to vector<4x128xf32>
    %104 = arith.select %102, %60, %103 : vector<4x128xi1>, vector<4x128xf32>
    %cst_32 = arith.constant dense<0.000000e+00> : vector<4xf32>
    %105 = vector.multi_reduction <add>, %104, %cst_32 [1] : vector<4x128xf32> to vector<4xf32>
    %106 = vector.shape_cast %105 : vector<4xf32> to vector<4x1xf32>
    %cst_33 = arith.constant 0.0322580636 : f32
    %107 = vector.broadcast %cst_33 : f32 to vector<4x1xf32>
    %108 = arith.mulf %106, %107 : vector<4x1xf32>
    %109 = math.sqrt %108 : vector<4x1xf32>
    %cst_34 = arith.constant 1.000000e-07 : f32
    %110 = vector.broadcast %cst_34 : f32 to vector<4x1xf32>
    %111 = arith.addf %109, %110 : vector<4x1xf32>
    %112 = tpu.reciprocal %111 : vector<4x1xf32> -> vector<4x1xf32>
    %113 = vector.shape_cast %112 : vector<4x1xf32> to vector<4x1xf32>
    %114 = vector.broadcast %113 : vector<4x1xf32> to vector<4x128xf32>
    %115 = arith.select %102, %114, %97 : vector<4x128xi1>, vector<4x128xf32>
    %c96_i32_35 = arith.constant 96 : i32
    %116 = vector.broadcast %c96_i32_35 : i32 to vector<4x128xi32>
    %117 = arith.cmpi sge, %1, %116 : vector<4x128xi32>
    %c128_i32_36 = arith.constant 128 : i32
    %118 = vector.broadcast %c128_i32_36 : i32 to vector<4x128xi32>
    %119 = arith.cmpi slt, %1, %118 : vector<4x128xi32>
    %120 = arith.andi %117, %119 : vector<4x128xi1>
    %cst_37 = arith.constant 0.000000e+00 : f32
    %121 = vector.broadcast %cst_37 : f32 to vector<4x128xf32>
    %122 = arith.select %120, %60, %121 : vector<4x128xi1>, vector<4x128xf32>
    %cst_38 = arith.constant dense<0.000000e+00> : vector<4xf32>
    %123 = vector.multi_reduction <add>, %122, %cst_38 [1] : vector<4x128xf32> to vector<4xf32>
    %124 = vector.shape_cast %123 : vector<4xf32> to vector<4x1xf32>
    %cst_39 = arith.constant 0.0322580636 : f32
    %125 = vector.broadcast %cst_39 : f32 to vector<4x1xf32>
    %126 = arith.mulf %124, %125 : vector<4x1xf32>
    %127 = math.sqrt %126 : vector<4x1xf32>
    %cst_40 = arith.constant 1.000000e-07 : f32
    %128 = vector.broadcast %cst_40 : f32 to vector<4x1xf32>
    %129 = arith.addf %127, %128 : vector<4x1xf32>
    %130 = tpu.reciprocal %129 : vector<4x1xf32> -> vector<4x1xf32>
    %131 = vector.shape_cast %130 : vector<4x1xf32> to vector<4x1xf32>
    %132 = vector.broadcast %131 : vector<4x1xf32> to vector<4x128xf32>
    %133 = arith.select %120, %132, %115 : vector<4x128xi1>, vector<4x128xf32>
    %134 = arith.mulf %59, %133 : vector<4x128xf32>
    %c0_41 = arith.constant 0 : index
    %c0_42 = arith.constant 0 : index
    %135 = vector.load %arg2[%c0_41, %c0_42] : memref<1x128xf32, #tpu.memory_space<vmem>>, vector<1x128xf32>
    %136 = vector.broadcast %135 : vector<1x128xf32> to vector<4x128xf32>
    %137 = arith.mulf %134, %136 : vector<4x128xf32>
    %c0_43 = arith.constant 0 : index
    %c0_44 = arith.constant 0 : index
    %138 = vector.load %arg3[%c0_43, %c0_44] : memref<1x128xf32, #tpu.memory_space<vmem>>, vector<1x128xf32>
    %139 = vector.broadcast %138 : vector<1x128xf32> to vector<4x128xf32>
    %140 = arith.addf %137, %139 : vector<4x128xf32>
    %c0_45 = arith.constant 0 : index
    %c0_46 = arith.constant 0 : index
    %141 = vector.load %arg4[%c0_45, %c0_46] : memref<4x128xf32, #tpu.memory_space<vmem>>, vector<4x128xf32>
    tpu.vector_store %arg4[%c0_45, %c0_46], %140 {strides = array<i32>} : memref<4x128xf32, #tpu.memory_space<vmem>>, vector<4x128xf32>,
    return
  }
  func.func @transform_0(%arg0: i32) -> (i32, i32) {
    %c0_i32 = arith.constant 0 : i32
    %c0_i32_0 = arith.constant 0 : i32
    return %arg0, %c0_i32 : i32, i32
  }
  func.func @transform_1(%arg0: i32) -> (i32, i32) {
    %c0_i32 = arith.constant 0 : i32
    %c0_i32_0 = arith.constant 0 : i32
    %c0_i32_1 = arith.constant 0 : i32
    return %c0_i32, %c0_i32_0 : i32, i32
  }
  func.func @transform_2(%arg0: i32) -> (i32, i32) {
    %c0_i32 = arith.constant 0 : i32
    %c0_i32_0 = arith.constant 0 : i32
    %c0_i32_1 = arith.constant 0 : i32
    return %c0_i32, %c0_i32_0 : i32, i32
  }
  func.func @transform_3(%arg0: i32) -> (i32, i32) {
    %c0_i32 = arith.constant 0 : i32
    %c0_i32_0 = arith.constant 0 : i32
    return %arg0, %c0_i32 : i32, i32
  }
}

</mosaic_0001>

<llo_original>
// kernel: _lambda_.1
$region0: #{_lambda_.1}
  #allocation0 [shape = 'u32[]', space=smem, size = 0x4, offset = 0x4, fixed_abs, tag = 'smem constant byte address 0x4 - core index']
  #allocation1 [shape = 'u32[144,128]{1,0:T(1,128)}', space=vmem, size = 0x12000, scoped, tag = 'internal scratch']
  %s0 = inlined_call_operand.vmem [shape: f32[4,128], index: 0, kind: input, shape index: {}]
  %s1 = inlined_call_operand.vmem [shape: f32[1,128], index: 1, kind: input, shape index: {}]
  %s2 = inlined_call_operand.vmem [shape: f32[1,128], index: 2, kind: input, shape index: {}]
  %s3 = inlined_call_operand.vmem [shape: f32[4,128], index: 3, kind: output, shape index: {}]
  %s4 = sld [smem:[#allocation0]]
  $region22: #{_lambda_.1} parent=0
    _
  %s6 = ssub.s32 1, %s4
  %s7 = scalar_select 0, %s6, %s4
  // Predicated region
  $region2: #{_lambda_.1} parent=0 // pred_check
    _
  $region3: #{_lambda_.1} parent=0 // pred_check_branch
    %9 = sbr.rel (0) target = $region5
  $region4: #{_lambda_.1} parent=0 // pred_region
    _
  $region5: #{_lambda_.1} parent=0 // pred_fallthru
    _
  // Predicated region
  $region6: #{_lambda_.1} parent=0 // pred_check
    _
  $region7: #{_lambda_.1} parent=0 // pred_check_branch
    %11 = sbr.rel (0) target = $region9
  $region8: #{_lambda_.1} parent=0 // pred_region
    _
  $region9: #{_lambda_.1} parent=0 // pred_fallthru
    _
  // Predicated region
  $region10: #{_lambda_.1} parent=0 // pred_check
    _
  $region11: #{_lambda_.1} parent=0 // pred_check_branch
    %13 = sbr.rel (0) target = $region13
  $region12: #{_lambda_.1} parent=0 // pred_region
    _
  $region13: #{_lambda_.1} parent=0 // pred_fallthru
    _
  %v14 = vld [vmem:[%s0] sm:$0xf]
  %v15 = vlaneseq
  %v16 = vand.u32 %v15, 127
  %vm17 = vcmp.ge.s32.totalorder %v16, 0
  %vm18 = vcmp.lt.s32.totalorder %v16, 32
  %vm19 = vmand %vm17, %vm18
  %v20 = vsel %vm19, %v14, 0.0
  %vm21 = vcmask 1043456
  %v22 = vsel %vm21, %v20, 0.0
  %23 = vadd.xlane.f32.xlu0 %v22
  %v24 = vpop.xlane.xlu0 %23
  %v25 = vmul.f32 %v24, 0.03125
  %v26 = vsel %vm19, %v25, 0.0
  %vm27 = vcmp.ge.s32.totalorder %v16, 32
  %vm28 = vcmp.lt.s32.totalorder %v16, 64
  %vm29 = vmand %vm27, %vm28
  %v30 = vsel %vm29, %v14, 0.0
  %v31 = vsel %vm21, %v30, 0.0
  %32 = vadd.xlane.f32.xlu0 %v31
  %v33 = vpop.xlane.xlu0 %32
  %v34 = vmul.f32 %v33, 0.03125
  %v35 = vsel %vm29, %v34, %v26
  %vm36 = vcmp.ge.s32.totalorder %v16, 64
  %vm37 = vcmp.lt.s32.totalorder %v16, 96
  %vm38 = vmand %vm36, %vm37
  %v39 = vsel %vm38, %v14, 0.0
  %v40 = vsel %vm21, %v39, 0.0
  %41 = vadd.xlane.f32.xlu0 %v40
  %v42 = vpop.xlane.xlu0 %41
  %v43 = vmul.f32 %v42, 0.03125
  %v44 = vsel %vm38, %v43, %v35
  %vm45 = vcmp.ge.s32.totalorder %v16, 96
  %vm46 = vcmp.lt.s32.totalorder %v16, 128
  %vm47 = vmand %vm45, %vm46
  %v48 = vsel %vm47, %v14, 0.0
  %v49 = vsel %vm21, %v48, 0.0
  %50 = vadd.xlane.f32.xlu0 %v49
  %v51 = vpop.xlane.xlu0 %50
  %v52 = vmul.f32 %v51, 0.03125
  %v53 = vsel %vm47, %v52, %v44
  %v54 = vsub.f32 %v14, %v53
  %v55 = vmul.f32 %v54, %v54
  %v56 = vsel %vm19, %v55, 0.0
  %v57 = vsel %vm21, %v56, 0.0
  %58 = vadd.xlane.f32.xlu0 %v57
  %v59 = vpop.xlane.xlu0 %58
  %v60 = vmul.f32 %v59, 0.032258064
  %v61 = vrsqrt.pop %v60
  %v62 = vmul.f32 %v60, %v61
  %vm63 = vcmp.eq.f32.partialorder %v60, inf
  %v64 = vsel %vm63, %v60, %v62
  %vm65 = vcmp.eq.f32.partialorder %v60, 0.0
  %v66 = vand.u32 %v60, 2147483648
  %v67 = vsel %vm65, %v66, %v64
  %v68 = vadd.f32 %v67, 1e-07
  %v69 = vrcp.pop %v68
  %v70 = vsel %vm19, %v69, 0.0
  %v71 = vsel %vm29, %v55, 0.0
  %v72 = vsel %vm21, %v71, 0.0
  %73 = vadd.xlane.f32.xlu0 %v72
  %v74 = vpop.xlane.xlu0 %73
  %v75 = vmul.f32 %v74, 0.032258064
  %v76 = vrsqrt.pop %v75
  %v77 = vmul.f32 %v75, %v76
  %vm78 = vcmp.eq.f32.partialorder %v75, inf
  %v79 = vsel %vm78, %v75, %v77
  %vm80 = vcmp.eq.f32.partialorder %v75, 0.0
  %v81 = vand.u32 %v75, 2147483648
  %v82 = vsel %vm80, %v81, %v79
  %v83 = vadd.f32 %v82, 1e-07
  %v84 = vrcp.pop %v83
  %v85 = vsel %vm29, %v84, %v70
  %v86 = vsel %vm38, %v55, 0.0
  %v87 = vsel %vm21, %v86, 0.0
  %88 = vadd.xlane.f32.xlu0 %v87
  %v89 = vpop.xlane.xlu0 %88
  %v90 = vmul.f32 %v89, 0.032258064
  %v91 = vrsqrt.pop %v90
  %v92 = vmul.f32 %v90, %v91
  %vm93 = vcmp.eq.f32.partialorder %v90, inf
  %v94 = vsel %vm93, %v90, %v92
  %vm95 = vcmp.eq.f32.partialorder %v90, 0.0
  %v96 = vand.u32 %v90, 2147483648
  %v97 = vsel %vm95, %v96, %v94
  %v98 = vadd.f32 %v97, 1e-07
  %v99 = vrcp.pop %v98
  %v100 = vsel %vm38, %v99, %v85
  %v101 = vsel %vm47, %v55, 0.0
  %v102 = vsel %vm21, %v101, 0.0
  %103 = vadd.xlane.f32.xlu0 %v102
  %v104 = vpop.xlane.xlu0 %103
  %v105 = vmul.f32 %v104, 0.032258064
  %v106 = vrsqrt.pop %v105
  %v107 = vmul.f32 %v105, %v106
  %vm108 = vcmp.eq.f32.partialorder %v105, inf
  %v109 = vsel %vm108, %v105, %v107
  %vm110 = vcmp.eq.f32.partialorder %v105, 0.0
  %v111 = vand.u32 %v105, 2147483648
  %v112 = vsel %vm110, %v111, %v109
  %v113 = vadd.f32 %v112, 1e-07
  %v114 = vrcp.pop %v113
  %v115 = vsel %vm47, %v114, %v100
  %v116 = vmul.f32 %v54, %v115
  %v117 = vld [vmem:[%s1] sm:$0x1]
  %v119 = vlaneseq
  %v120 = vshrl.u32 %v119, 7
  %v121 = vsub.s32 0, %v120
  %v122 = vrot.slane %v117, %v121
  %v124 = vmul.f32 %v116, %v122
  %v125 = vld [vmem:[%s2] sm:$0x1]
  %v127 = vlaneseq
  %v128 = vshrl.u32 %v127, 7
  %v129 = vsub.s32 0, %v128
  %v130 = vrot.slane %v125, %v129
  %v132 = vadd.f32 %v124, %v130
  %133 = vst [vmem:[%s3] sm:$0xf] %v132
  // Predicated region
  $region14: #{_lambda_.1} parent=0 // pred_check
    _
  $region15: #{_lambda_.1} parent=0 // pred_check_branch
    %135 = sbr.rel (0) target = $region17
  $region16: #{_lambda_.1} parent=0 // pred_region
    _
  $region17: #{_lambda_.1} parent=0 // pred_fallthru
    _
  // Predicated region
  $region18: #{_lambda_.1} parent=0 // pred_check
    _
  $region19: #{_lambda_.1} parent=0 // pred_check_branch
    %137 = sbr.rel (0) target = $region21
  $region20: #{_lambda_.1} parent=0 // pred_region
    _
  $region21: #{_lambda_.1} parent=0 // pred_fallthru
    _

</llo_original>
